<compile_context>
chip_gen: v7x
topology: tpu7x:2x2x1
jax: 0.10.0
libtpu: 0.0.40
codegen_flags: <defaults>
</compile_context>

<pallas_src>
import math
import functools

import jax
import jax.numpy as jnp
from jax.experimental import pallas as pl
from jax.experimental.pallas import tpu as pltpu


# ---------------------------------------------------------------------------
# Kernels
# ---------------------------------------------------------------------------

def _encoding_tile(pos_ref, fe_ref, ph_ref, *, max_spatial_distance, groups):
    """Sinusoidal encoding tile of shape (tile_rows, lanes) in f32.

    pos_ref: (T, groups)       raw positions (clamped in-kernel)
    fe_ref:  (groups, lanes)   block-expansion matrix with exp(freq_bands)/max_dist
                               folded in (groups==1: a plain (1, lanes) freq row)
    ph_ref:  (1, lanes)        0 / pi/2 alternating phase (cos(t) == sin(t + pi/2))
    """
    pos = jnp.clip(pos_ref[...].astype(jnp.float32), 0.0, max_spatial_distance)
    if groups == 1:
        arg = pos * fe_ref[...]                                # (T,1)*(1,L) broadcast
    else:
        # Lane expansion + frequency scaling on the MXU (idle otherwise).
        arg = jnp.dot(pos, fe_ref[...], preferred_element_type=jnp.float32)
    return jnp.sin(arg + ph_ref[...])


def _spe_enc_kernel(pos_ref, fe_ref, ph_ref, out_ref, *,
                    max_spatial_distance, groups):
    enc = _encoding_tile(pos_ref, fe_ref, ph_ref,
                         max_spatial_distance=max_spatial_distance, groups=groups)
    out_ref[...] = enc.astype(out_ref.dtype)


def _spe_add_kernel(pos_ref, fe_ref, ph_ref, x_ref, out_ref, *,
                    max_spatial_distance, groups, low_precision_add):
    enc = _encoding_tile(pos_ref, fe_ref, ph_ref,
                         max_spatial_distance=max_spatial_distance, groups=groups)
    if low_precision_add:
        # bf16 add (v6e/v7x): halves vreg/VMEM pressure on the store path.
        out_ref[...] = x_ref[...] + enc.astype(out_ref.dtype)
    else:
        out_ref[...] = (x_ref[...].astype(jnp.float32) + enc).astype(out_ref.dtype)


# ---------------------------------------------------------------------------
# Wrapper helpers
# ---------------------------------------------------------------------------

_VMEM_LIMIT_BYTES = 32 * 1024 * 1024       # explicit: lets v5e exceed its 16 MiB default
_BLOCK_BUDGET_BYTES = 24 * 1024 * 1024     # double-buffered blocks + temporaries


def _choose_groups(n_total, d_model):
    """Fold k = lcm(d_model,128)/d_model rows into the lane dim when possible,
    so the output lane width is a multiple of 128 (unmasked vst)."""
    k = math.lcm(d_model, 128) // d_model
    if k <= 1:
        return 1
    lanes = k * d_model
    if n_total % k == 0 and k <= 64 and lanes <= 4096:
        return k
    return 1


def _pick_tile_rows(n_rows, lanes, groups, x_itemsize, out_itemsize, max_tile_rows):
    """Largest row tile (multiple of 8) that keeps double-buffered blocks plus
    in-kernel f32 temporaries under the block budget, capped so the grid keeps
    >= ~4 steps (megacore sharding on v7x)."""
    budget = _BLOCK_BUDGET_BYTES
    # grid-invariant param streams (expansion matrix + phase row), double-buffered
    budget -= 2 * (groups * lanes + lanes) * 4
    budget = max(budget, 4 * 1024 * 1024)

    pos_lane_pad = max(groups, 128)                 # positions block is lane-padded
    per_row_blocks = 2 * (lanes * out_itemsize      # output, double-buffered
                          + lanes * x_itemsize      # x (0 on the enc-only path)
                          + pos_lane_pad * 4)       # positions
    per_row_temps = (3 if x_itemsize else 2) * lanes * 4   # enc/arg (+x f32 cast)
    per_row = per_row_blocks + per_row_temps

    t = max(8, (budget // per_row) // 8 * 8)
    t = min(t, max(8, (max_tile_rows // 8) * 8))
    # Keep at least ~4 grid steps so the "parallel" axis can shard across TCs.
    t = min(t, max(8, ((n_rows + 3) // 4) // 8 * 8))
    if n_rows <= t:
        return n_rows                               # single exact-fit block
    return t


def _default_low_precision_add(x_dtype, out_dtype):
    """bf16 add only where a bf16 VALU exists (not v5e); best-effort detection."""
    if jnp.dtype(x_dtype) != jnp.dtype(jnp.bfloat16):
        return False
    if jnp.dtype(out_dtype) != jnp.dtype(jnp.bfloat16):
        return False
    try:
        kind = jax.devices()[0].device_kind.lower()
    except Exception:
        return False
    return "v5" not in kind


# ---------------------------------------------------------------------------
# Wrapper
# ---------------------------------------------------------------------------

def spatial_position_encoding(positions, x=None, *, d_model,
                              max_spatial_distance=100.0,
                              out_dtype=None,
                              max_tile_rows=16384):
    """positions: [batch, ...] float; x: optional [batch, ..., d_model]."""
    assert d_model % 2 == 0
    orig_shape = positions.shape
    n_total = math.prod(orig_shape)

    if x is not None:
        assert x.shape == (*orig_shape, d_model)
        if out_dtype is None:
            out_dtype = x.dtype
    elif out_dtype is None:
        out_dtype = jnp.float32

    # Host-side parameters (register_buffer('freq_bands', ...) with 1/max_dist and
    # the sin/cos interleave folded in).
    freq_bands = jnp.arange(0, d_model, 2, dtype=jnp.float32) * (
        -math.log(10000.0) / d_model)                                   # (d_model//2,)
    freq_row = jnp.repeat(jnp.exp(freq_bands) / max_spatial_distance, 2)    # (d_model,)
    phase_row = jnp.tile(jnp.array([0.0, math.pi / 2.0], jnp.float32),
                         d_model // 2)                                      # (d_model,)

    groups = _choose_groups(n_total, d_model)
    lanes = groups * d_model
    n_rows = n_total // groups

    if groups == 1:
        fe = freq_row.reshape(1, lanes)                       # broadcast-mul path
    else:
        # 0/1 block-expansion matrix with the frequency scaling baked in:
        # fe[g, g*d_model + d] = freq_row[d], used via one MXU dot per tile.
        fe = jnp.kron(jnp.eye(groups, dtype=jnp.float32),
                      freq_row.reshape(1, d_model))           # (groups, lanes)
    ph = jnp.tile(phase_row, groups).reshape(1, lanes)
    pos2d = positions.reshape(n_rows, groups).astype(jnp.float32)

    x_itemsize = 0 if x is None else jnp.dtype(x.dtype).itemsize
    out_itemsize = jnp.dtype(out_dtype).itemsize
    tile = _pick_tile_rows(n_rows, lanes, groups, x_itemsize, out_itemsize,
                           max_tile_rows)
    grid = (pl.cdiv(n_rows, tile),)

    static = dict(max_spatial_distance=float(max_spatial_distance), groups=groups)

    in_specs = [
        pl.BlockSpec((tile, groups), lambda i: (i, 0)),       # positions
        pl.BlockSpec((groups, lanes), lambda i: (0, 0)),      # freq / expansion matrix
        pl.BlockSpec((1, lanes), lambda i: (0, 0)),           # phase row
    ]
    operands = [pos2d, fe, ph]

    if x is None:
        kernel = functools.partial(_spe_enc_kernel, **static)
    else:
        low_prec = _default_low_precision_add(x.dtype, out_dtype)
        kernel = functools.partial(_spe_add_kernel, low_precision_add=low_prec,
                                   **static)
        in_specs.append(pl.BlockSpec((tile, lanes), lambda i: (i, 0)))
        operands.append(x.reshape(n_rows, lanes))

    out = pl.pallas_call(
        kernel,
        out_shape=jax.ShapeDtypeStruct((n_rows, lanes), out_dtype),
        grid_spec=pltpu.PrefetchScalarGridSpec(
            num_scalar_prefetch=0,
            grid=grid,
            in_specs=in_specs,
            out_specs=pl.BlockSpec((tile, lanes), lambda i: (i, 0)),
        ),
        compiler_params=pltpu.CompilerParams(
            dimension_semantics=("parallel",),
            vmem_limit_bytes=_VMEM_LIMIT_BYTES),
    )(*operands)

    return out.reshape(*orig_shape, d_model)


# ---------------------------------------------------------------------------
# Pure-JAX reference (mirrors the PyTorch module, eval mode)
# ---------------------------------------------------------------------------

def _reference(positions, x, d_model, max_spatial_distance=100.0):
    freq_bands = jnp.arange(0, d_model, 2, dtype=jnp.float32) * (
        -math.log(10000.0) / d_model)
    pos_norm = jnp.clip(positions.astype(jnp.float32) / max_spatial_distance, 0.0, 1.0)
    pos_flat = pos_norm.reshape(-1, 1)
    args = pos_flat * jnp.exp(freq_bands)[None, :]
    enc = jnp.zeros((pos_flat.shape[0], d_model), jnp.float32)
    enc = enc.at[:, 0::2].set(jnp.sin(args))
    enc = enc.at[:, 1::2].set(jnp.cos(args))
    enc = enc.reshape(*positions.shape, d_model)
    return enc if x is None else x.astype(jnp.float32) + enc


if __name__ == "__main__":
    key = jax.random.PRNGKey(0)
    k1, k2, k3 = jax.random.split(key, 3)

    # Test 1: d_model=32 (lane-packed, k=4), x given, clamp exercised on both sides.
    B, S, D = 2, 8, 32
    positions = jax.random.uniform(k1, (B, S), jnp.float32) * 120.0 - 10.0
    x = jax.random.normal(k2, (B, S, D), jnp.float32)
    out = jax.block_until_ready(spatial_position_encoding(positions, x, d_model=D))
    ref = _reference(positions, x, D)
    assert out.shape == (B, S, D)
    assert jnp.allclose(out, ref, atol=1e-5, rtol=1e-5)

    # Test 2: enc-only path (x=None) — no zeros streamed through the kernel.
    out2 = jax.block_until_ready(spatial_position_encoding(positions, None, d_model=D))
    ref2 = _reference(positions, None, D)
    assert jnp.allclose(out2, ref2, atol=1e-5, rtol=1e-5)

    # Test 3: d_model=48, N=18 not divisible by k=8 -> unpacked fallback, ragged grid.
    B3, S3, D3 = 2, 9, 48
    pos3 = jax.random.uniform(k3, (B3, S3), jnp.float32) * 100.0
    x3 = jax.random.normal(k2, (B3, S3, D3), jnp.float32)
    out3 = jax.block_until_ready(spatial_position_encoding(pos3, x3, d_model=D3))
    ref3 = _reference(pos3, x3, D3)
    assert jnp.allclose(out3, ref3, atol=1e-5, rtol=1e-5)

    # Test 4: d_model=48 with N divisible by k=8 -> LCM lane packing (lanes=384).
    B4, S4, D4 = 2, 8, 48
    pos4 = jax.random.uniform(k1, (B4, S4), jnp.float32) * 100.0
    x4 = jax.random.normal(k3, (B4, S4, D4), jnp.float32)
    out4 = jax.block_until_ready(spatial_position_encoding(pos4, x4, d_model=D4))
    ref4 = _reference(pos4, x4, D4)
    assert jnp.allclose(out4, ref4, atol=1e-5, rtol=1e-5)

    # Test 5: packed layout, ragged multi-block grid (400 positions -> 100 packed rows).
    B5, S5, D5 = 4, 100, 32
    pos5 = jax.random.uniform(k2, (B5, S5), jnp.float32) * 100.0
    x5 = jax.random.normal(k1, (B5, S5, D5), jnp.float32)
    out5 = jax.block_until_ready(spatial_position_encoding(pos5, x5, d_model=D5))
    ref5 = _reference(pos5, x5, D5)
    assert jnp.allclose(out5, ref5, atol=1e-5, rtol=1e-5)

    # Test 6: bf16 x / bf16 out (low-precision add on v6e/v7x, f32 add on v5e).
    x6 = jax.random.normal(k3, (B, S, D), jnp.float32).astype(jnp.bfloat16)
    out6 = jax.block_until_ready(spatial_position_encoding(positions, x6, d_model=D))
    ref6 = _reference(positions, x6, D)
    assert out6.dtype == jnp.bfloat16
    assert jnp.allclose(out6.astype(jnp.float32), ref6, atol=5e-2, rtol=5e-2)

    print("KERNEL_OK")
</pallas_src>

<mosaic_0001>
module attributes {stable_mosaic.version = 11 : i64} {
  func.func @_spe_add_kernel(%arg0: i32, %arg1: memref<4x4xf32, #tpu.memory_space<vmem>>, %arg2: memref<4x128xf32, #tpu.memory_space<vmem>>, %arg3: memref<1x128xf32, #tpu.memory_space<vmem>>, %arg4: memref<4x128xf32, #tpu.memory_space<vmem>>, %arg5: memref<4x128xf32, #tpu.memory_space<vmem>>) attributes {dimension_semantics = [#tpu.dimension_semantics<parallel>], iteration_bounds = array<i64: 1>, scalar_prefetch = 0 : i64, scratch_operands = 0 : i64, tpu.core_type = #tpu.core_type<tc>, window_params = [{transform_indices = @transform_0, window_bounds = array<i64: 4, 4>}, {pipeline_mode = #tpu.pipeline_mode<synchronous>, transform_indices = @transform_1, window_bounds = array<i64: 4, 128>}, {pipeline_mode = #tpu.pipeline_mode<synchronous>, transform_indices = @transform_2, window_bounds = array<i64: 1, 128>}, {transform_indices = @transform_3, window_bounds = array<i64: 4, 128>}, {transform_indices = @transform_4, window_bounds = array<i64: 4, 128>}]} {
    %c0 = arith.constant 0 : index
    %c0_0 = arith.constant 0 : index
    %0 = vector.load %arg1[%c0, %c0_0] : memref<4x4xf32, #tpu.memory_space<vmem>>, vector<4x4xf32>
    %cst = arith.constant 0.000000e+00 : f32
    %cst_1 = arith.constant 1.000000e+02 : f32
    %1 = vector.broadcast %cst : f32 to vector<4x4xf32>
    %2 = arith.maximumf %1, %0 : vector<4x4xf32>
    %3 = vector.broadcast %cst_1 : f32 to vector<4x4xf32>
    %4 = arith.minimumf %3, %2 : vector<4x4xf32>
    %c0_2 = arith.constant 0 : index
    %c0_3 = arith.constant 0 : index
    %5 = vector.load %arg2[%c0_2, %c0_3] : memref<4x128xf32, #tpu.memory_space<vmem>>, vector<4x128xf32>
    %cst_4 = arith.constant dense<0.000000e+00> : vector<4x128xf32>
    %6 = tpu.matmul %4, %5, %cst_4 {dimension_numbers = #tpu.dot_dimension_numbers<[1], [0], [0], [1], [0, 0, 1, 1], [], []>} : vector<4x4xf32>, vector<4x128xf32>, vector<4x128xf32> -> vector<4x128xf32>
    %c0_5 = arith.constant 0 : index
    %c0_6 = arith.constant 0 : index
    %7 = vector.load %arg3[%c0_5, %c0_6] : memref<1x128xf32, #tpu.memory_space<vmem>>, vector<1x128xf32>
    %8 = vector.broadcast %7 : vector<1x128xf32> to vector<4x128xf32>
    %9 = arith.addf %6, %8 : vector<4x128xf32>
    %10 = math.sin %9 : vector<4x128xf32>
    %c0_7 = arith.constant 0 : index
    %c0_8 = arith.constant 0 : index
    %11 = vector.load %arg4[%c0_7, %c0_8] : memref<4x128xf32, #tpu.memory_space<vmem>>, vector<4x128xf32>
    %12 = arith.addf %11, %10 : vector<4x128xf32>
    %c0_9 = arith.constant 0 : index
    %c0_10 = arith.constant 0 : index
    %13 = vector.load %arg5[%c0_9, %c0_10] : memref<4x128xf32, #tpu.memory_space<vmem>>, vector<4x128xf32>
    tpu.vector_store %arg5[%c0_9, %c0_10], %12 {strides = array<i32>} : memref<4x128xf32, #tpu.memory_space<vmem>>, vector<4x128xf32>,
    return
  }
  func.func @transform_0(%arg0: i32) -> (i32, i32) {
    %c0_i32 = arith.constant 0 : i32
    %c0_i32_0 = arith.constant 0 : i32
    return %arg0, %c0_i32 : i32, i32
  }
  func.func @transform_1(%arg0: i32) -> (i32, i32) {
    %c0_i32 = arith.constant 0 : i32
    %c0_i32_0 = arith.constant 0 : i32
    %c0_i32_1 = arith.constant 0 : i32
    return %c0_i32, %c0_i32_0 : i32, i32
  }
  func.func @transform_2(%arg0: i32) -> (i32, i32) {
    %c0_i32 = arith.constant 0 : i32
    %c0_i32_0 = arith.constant 0 : i32
    %c0_i32_1 = arith.constant 0 : i32
    return %c0_i32, %c0_i32_0 : i32, i32
  }
  func.func @transform_3(%arg0: i32) -> (i32, i32) {
    %c0_i32 = arith.constant 0 : i32
    %c0_i32_0 = arith.constant 0 : i32
    return %arg0, %c0_i32 : i32, i32
  }
  func.func @transform_4(%arg0: i32) -> (i32, i32) {
    %c0_i32 = arith.constant 0 : i32
    %c0_i32_0 = arith.constant 0 : i32
    return %arg0, %c0_i32 : i32, i32
  }
}

</mosaic_0001>

<llo_original>
// kernel: tpu_custom_call.1
$region0: #{tpu_custom_call.1}
  #allocation0 [shape = 'u32[]', space=smem, size = 0x4, offset = 0x4, fixed_abs, tag = 'smem constant byte address 0x4 - core index']
  #allocation1 [shape = 'u32[144,128]{1,0:T(1,128)}', space=vmem, size = 0x12000, scoped, tag = 'internal scratch']
  %s0 = inlined_call_operand.hbm [shape: f32[4,4], index: 0, kind: input, shape index: {}]
  %s1 = inlined_call_operand.hbm [shape: f32[4,128], index: 1, kind: input, shape index: {}]
  %s2 = inlined_call_operand.vmem [shape: f32[1,128], index: 2, kind: input, shape index: {}]
  %s3 = inlined_call_operand.vmem [shape: f32[4,128], index: 3, kind: input, shape index: {}]
  %s4 = inlined_call_operand.hbm [shape: f32[4,128], index: 4, kind: output, shape index: {}]
  %s5 = sld [smem:[#allocation0]]
  $region34: #{tpu_custom_call.1} parent=0
    _
  %s7 = ssub.s32 1, %s5
  %s8 = scalar_select 0, %s7, %s5
  $region1: #{tpu_custom_call.1} parent=0
    #allocation2 [shape = 'u8[2048]{0}', space=vmem, size = 0x800, scoped, tag = 'input window, operand 0, single buffered']
    #allocation3 [shape = 's32[1]{0}', space=sflag, size = 0x4, scoped, tag = 'scoped memory for tpu_custom_call.1']
    #allocation4 [shape = 's32[1]{0}', space=sflag, size = 0x4, scoped, tag = 'scoped memory for tpu_custom_call.1']
    #allocation5 [shape = 'u8[2048]{0}', space=vmem, size = 0x800, scoped, tag = 'input window, operand 1, single buffered']
    #allocation6 [shape = 's32[1]{0}', space=sflag, size = 0x4, scoped, tag = 'scoped memory for tpu_custom_call.1']
    #allocation7 [shape = 'u8[2048]{0}', space=vmem, size = 0x800, scoped, tag = 'output window, operand 0, single buffered']
    %9 = vsyncpa [#allocation3], 0
    %10 = vsyncpa [#allocation6], 0
    %11 = vsyncpa [#allocation4], 0
    // Predicated region
    $region2: #{tpu_custom_call.1} parent=1 // pred_check
      _
    $region3: #{tpu_custom_call.1} parent=1 // pred_check_branch
      %13 = sbr.rel (0) target = $region5
    $region4: #{tpu_custom_call.1} parent=1 // pred_region
      %s15 = ssub.s32 64, 64
      %16 = vsyncadd [#allocation3], %s15
      %s18 = sshll.u32 [#allocation2], 4
      %s19 = int_to_ptr.vmem [resolvable:$true] %s18
      %21 = dma.hbm_to_vmem [thread:$0]  %s0, 64, %s19, [#allocation3]
    $region5: #{tpu_custom_call.1} parent=1 // pred_fallthru
      _
    // Predicated region
    $region6: #{tpu_custom_call.1} parent=1 // pred_check
      _
    $region7: #{tpu_custom_call.1} parent=1 // pred_check_branch
      %23 = sbr.rel (0) target = $region9
    $region8: #{tpu_custom_call.1} parent=1 // pred_region
      %s25 = ssub.s32 64, 64
      %26 = vsyncadd [#allocation6], %s25
      %s28 = sshll.u32 [#allocation5], 4
      %s29 = int_to_ptr.vmem [resolvable:$true] %s28
      %31 = dma.hbm_to_vmem [thread:$0]  %s1, 64, %s29, [#allocation6]
    $region9: #{tpu_custom_call.1} parent=1 // pred_fallthru
      _
    // Predicated region
    $region10: #{tpu_custom_call.1} parent=1 // pred_check
      _
    $region11: #{tpu_custom_call.1} parent=1 // pred_check_branch
      %33 = sbr.rel (0) target = $region13
    $region12: #{tpu_custom_call.1} parent=1 // pred_region
      _
    $region13: #{tpu_custom_call.1} parent=1 // pred_fallthru
      _
    // Predicated region
    $region14: #{tpu_custom_call.1} parent=1 // pred_check
      _
    $region15: #{tpu_custom_call.1} parent=1 // pred_check_branch
      %35 = sbr.rel (0) target = $region17
    $region16: #{tpu_custom_call.1} parent=1 // pred_region
      _
    $region17: #{tpu_custom_call.1} parent=1 // pred_fallthru
      _
    // Predicated region
    $region18: #{tpu_custom_call.1} parent=1 // pred_check
      _
    $region19: #{tpu_custom_call.1} parent=1 // pred_check_branch
      %37 = sbr.rel (0) target = $region21
    $region20: #{tpu_custom_call.1} parent=1 // pred_region
      %38 = dma.done [#allocation3], 64
    $region21: #{tpu_custom_call.1} parent=1 // pred_fallthru
      _
    // Predicated region
    $region22: #{tpu_custom_call.1} parent=1 // pred_check
      _
    $region23: #{tpu_custom_call.1} parent=1 // pred_check_branch
      %40 = sbr.rel (0) target = $region25
    $region24: #{tpu_custom_call.1} parent=1 // pred_region
      %41 = dma.done [#allocation6], 64
    $region25: #{tpu_custom_call.1} parent=1 // pred_fallthru
      _
    %v42 = vld [vmem:[#allocation2] sm:$0xf]
    %v43 = vmax.f32 %v42, 0.0
    %v44 = vmin.f32 %v43, 100.0
    %v45 = vld [vmem:[#allocation5] sm:$0xf]
    %v46 = vld [vmem:[%s2] sm:$0x1]
    %v48 = vlaneseq
    %v49 = vshrl.u32 %v48, 7
    %v50 = vsub.s32 0, %v49
    %v51 = vrot.slane %v46, %v50
    %vm53 = vcmask 31744
    %v55 = vsel %vm53, %v44, 0
    %vm57 = vcmask 1043456
    %v59 = vsel %vm57, %v45, 0
    %61 = vmatprep.subr.mxu0 0.0
    %62 = vmatpush1.msra.mxu0 %v59
    %63 = vmatprep.subr.mxu0 0.0
    %64 = vmatpush1.msra.mxu0 0.0
    %65 = vmatprep.subr.mxu0 0.0
    %66 = vmatpush1.msra.mxu0 0.0
    %67 = vmatprep.subr.mxu0 0.0
    %68 = vmatpush1.msra.mxu0 0.0
    %69 = vmatprep.subr.mxu0 0.0
    %70 = vmatpush1.msra.mxu0 0.0
    %71 = vmatprep.subr.mxu0 0.0
    %72 = vmatpush1.msra.mxu0 0.0
    %73 = vmatprep.subr.mxu0 0.0
    %74 = vmatpush1.msra.mxu0 0.0
    %75 = vmatprep.subr.mxu0 0.0
    %76 = vmatpush1.msra.mxu0 0.0
    %77 = vmatprep.subr.mxu0 0.0
    %78 = vmatpush1.msra.mxu0 0.0
    %79 = vmatprep.subr.mxu0 0.0
    %80 = vmatpush1.msra.mxu0 0.0
    %81 = vmatprep.subr.mxu0 0.0
    %82 = vmatpush1.msra.mxu0 0.0
    %83 = vmatprep.subr.mxu0 0.0
    %84 = vmatpush1.msra.mxu0 0.0
    %85 = vmatprep.subr.mxu0 0.0
    %86 = vmatpush1.msra.mxu0 0.0
    %87 = vmatprep.subr.mxu0 0.0
    %88 = vmatpush1.msra.mxu0 0.0
    %89 = vmatprep.subr.mxu0 0.0
    %90 = vmatpush1.msra.mxu0 0.0
    %91 = vmatprep.subr.mxu0 0.0
    %92 = vmatpush1.msra.mxu0 0.0
    %93 = vmatprep.subr.mxu0 0.0
    %94 = vmatpush1.msra.mxu0 0.0
    %95 = vmatprep.subr.mxu0 0.0
    %96 = vmatpush1.msra.mxu0 0.0
    %97 = vmatprep.subr.mxu0 0.0
    %98 = vmatpush1.msra.mxu0 0.0
    %99 = vmatprep.subr.mxu0 0.0
    %100 = vmatpush1.msra.mxu0 0.0
    %101 = vmatprep.subr.mxu0 0.0
    %102 = vmatpush1.msra.mxu0 0.0
    %103 = vmatprep.subr.mxu0 0.0
    %104 = vmatpush1.msra.mxu0 0.0
    %105 = vmatprep.subr.mxu0 0.0
    %106 = vmatpush1.msra.mxu0 0.0
    %107 = vmatprep.subr.mxu0 0.0
    %108 = vmatpush1.msra.mxu0 0.0
    %109 = vmatprep.subr.mxu0 0.0
    %110 = vmatpush1.msra.mxu0 0.0
    %111 = vmatprep.subr.mxu0 0.0
    %112 = vmatpush1.msra.mxu0 0.0
    %113 = vmatprep.subr.mxu0 0.0
    %114 = vmatpush1.msra.mxu0 0.0
    %115 = vmatprep.subr.mxu0 0.0
    %116 = vmatpush1.msra.mxu0 0.0
    %117 = vmatprep.subr.mxu0 0.0
    %118 = vmatpush1.msra.mxu0 0.0
    %119 = vmatprep.subr.mxu0 0.0
    %120 = vmatpush1.msra.mxu0 0.0
    %121 = vmatprep.subr.mxu0 0.0
    %122 = vmatpush1.msra.mxu0 0.0
    %123 = vmatprep.subr.mxu0 0.0
    %124 = vmatpush1.msra.mxu0 0.0
    %125 = vmatprep.mubr.f32.mxu0 0.0
    %126 = vmatmul.mubr.f32.gmra.mrb[0].mxu0 %v55
    %v127 = vpop.f32.mrb[0].mxu0
    %v128 = vadd.f32 %v51, %v127
    %v129 = vpop.f32.mrb[0].mxu0
    %130 = vdwg.mxu0
    %v131 = vand.u32 2147483647, %v128
    %vm132 = vcmp.le.f32.partialorder %v131, 0.7853982
    %vm133 = vcmp.lt.s32.totalorder %v128, 0
    %v134 = vand.u32 %v128, 2139095040
    %v135 = vshrl.u32 %v134, 23
    %v136 = vsub.s32 %v135, 127
    %v137 = vand.u32 2147483647, %v128
    %v138 = vand.u32 %v137, 8388607
    %v139 = vor.u32 %v138, 8388608
    %v140 = vsub.s32 0, %v139
    %v141 = vadd.s32 %v136, 1
    %vm142 = vcmp.gt.s32.totalorder %v141, 0
    %v143 = vsel %vm142, %v141, 0
    %v144 = vshrl.u32 %v143, 5
    %v145 = vand.u32 %v143, 31
    %v146 = vsub.s32 32, %v145
    %v147 = vshrl.u32 683565275, %v146
    %v148 = vshll.u32 683565275, %v145
    %v149 = vshrl.u32 2475754826, %v146
    %v150 = vor.u32 %v148, %v149
    %v151 = vshll.u32 2475754826, %v145
    %v152 = vshrl.u32 2131351028, %v146
    %v153 = vor.u32 %v151, %v152
    %v154 = vshll.u32 2131351028, %v145
    %v155 = vshrl.u32 2102212464, %v146
    %v156 = vor.u32 %v154, %v155
    %v157 = vshll.u32 2102212464, %v145
    %v158 = vshrl.u32 920167782, %v146
    %v159 = vor.u32 %v157, %v158
    %v160 = vshll.u32 920167782, %v145
    %v161 = vshrl.u32 1326507024, %v146
    %v162 = vor.u32 %v160, %v161
    %vm163 = vcmp.lt.s32.totalorder %v144, 1
    %vm164 = vcmp.lt.s32.totalorder %v144, 2
    %vm165 = vcmp.lt.s32.totalorder %v144, 3
    %vm166 = vcmp.lt.s32.totalorder %v144, 4
    %v167 = vsel %vm163, %v147, %v150
    %v168 = vsel %vm166, %v156, 2102212464
    %v169 = vsel %vm165, %v153, %v168
    %v170 = vsel %vm164, %v167, %v169
    %v171 = vsel %vm163, %v150, %v153
    %v172 = vsel %vm166, %v159, 920167782
    %v173 = vsel %vm165, %v156, %v172
    %v174 = vsel %vm164, %v171, %v173
    %v175 = vsel %vm163, %v153, %v156
    %v176 = vsel %vm166, %v162, 1326507024
    %v177 = vsel %vm165, %v159, %v176
    %v178 = vsel %vm164, %v175, %v177
    %v179 = vshll.u32 %v139, 8
    %v180 = vmul.u32.u64.compose %v179, %v178
    %v181 = vextract.low.u32 %v180
    %v182 = vextract.high.u32 %v180
    %v183 = vmul.u32.u64.compose %v179, %v174
    %v184 = vextract.low.u32 %v183
    %v185 = vextract.high.u32 %v183
    %v186 = vmul.u32 %v179, %v170
    %v187 = vadd.s32 %v182, %v184
    %vm188 = vc.u32 %v182, %v184
    %v189 = vadd.s32 %v185, 1
    %v190 = vsel %vm188, %v189, %v185
    %v191 = vadd.s32 %v186, %v190
    %v192 = vadd.s32 %v191, 536870912
    %v193 = vshrl.u32 %v192, 30
    %v194 = vshll.u32 %v193, 30
    %v195 = vsub.s32 %v191, %v194
    %vm196 = vcmp.lt.s32.totalorder %v195, 0
    %v197 = vsub.s32 0, %v195
    %v198 = vsel %vm196, %v197, %v195
    %v199 = vclz %v198
    %v200 = vsub.s32 %v199, 2
    %vm201 = vcmp.gt.s32.totalorder 0, %v200
    %v202 = vsel %vm201, 0, %v200
    %v203 = vsub.s32 32, %v202
    %v204 = vshll.u32 %v195, %v202
    %v205 = vshrl.u32 %v187, %v203
    %v206 = vor.u32 %v204, %v205
    %v207 = vsub.s32 4294967266, %v202
    %v208 = vadd.s32 %v207, 127
    %v209 = vshll.u32 %v208, 23
    %v210 = vor.u32 4788187, %v209
    %v211 = vand.u32 2147483647, %v210
    %v213 = vcvt.s32.f32 %v206
    %v214 = vmul.f32 %v213, %v211
    %v215 = vxor.u32 %v214, 2147483648
    %v216 = vsel %vm133, %v215, %v214
    %v217 = vsub.s32 4, %v193
    %v218 = vsel %vm133, %v217, %v193
    %v219 = vsel %vm132, %v128, %v216
    %v220 = vsel %vm132, 0, %v218
    %v221 = vcosq.f32.pop %v219
    %v222 = vsinq.f32.pop %v219
    %vm223 = vweird.f32 %v128
    %v224 = vadd.s32 %v220, 3
    %v225 = vand.u32 %v224, 3
    %vm226 = vcmp.lt.s32.totalorder %v225, 2
    %vm227 = vcmp.eq.s32.totalorder %v225, 0
    %v228 = vxor.u32 %v222, 2147483648
    %v229 = vsel %vm227, %v221, %v228
    %vm230 = vcmp.eq.s32.totalorder %v225, 2
    %v231 = vxor.u32 %v221, 2147483648
    %v232 = vsel %vm230, %v231, %v222
    %v233 = vsel %vm226, %v229, %v232
    %v234 = vsel %vm223, nan, %v233
    %v235 = vld [vmem:[%s3] sm:$0xf]
    %v236 = vadd.f32 %v235, %v234
    %237 = vst [vmem:[#allocation7] sm:$0xf] %v236
    // Predicated region
    $region26: #{tpu_custom_call.1} parent=1 // pred_check
      _
    $region27: #{tpu_custom_call.1} parent=1 // pred_check_branch
      %239 = sbr.rel (0) target = $region29
    $region28: #{tpu_custom_call.1} parent=1 // pred_region
      %s241 = ssub.s32 64, 64
      %242 = vsyncadd [#allocation4], %s241
      %s244 = sshll.u32 [#allocation7], 4
      %s245 = int_to_ptr.vmem [resolvable:$true] %s244
      %247 = dma.vmem_to_hbm [thread:$0]  %s245, 64, %s4, [#allocation4]
    $region29: #{tpu_custom_call.1} parent=1 // pred_fallthru
      _
    // Predicated region
    $region30: #{tpu_custom_call.1} parent=1 // pred_check
      _
    $region31: #{tpu_custom_call.1} parent=1 // pred_check_branch
      %249 = sbr.rel (0) target = $region33
    $region32: #{tpu_custom_call.1} parent=1 // pred_region
      %250 = dma.done [#allocation4], 64
    $region33: #{tpu_custom_call.1} parent=1 // pred_fallthru
      _
    %251 = vsyncpa [#allocation3], 1
    %252 = vsyncpa [#allocation6], 1
    %253 = vsyncpa [#allocation4], 1

</llo_original>
